<compile_context>
chip_gen: v7x
topology: tpu7x:2x2x1
jax: 0.10.0
libtpu: 0.0.40
codegen_flags: <defaults>
</compile_context>

<pallas_src>
import math

import jax
import jax.numpy as jnp
from jax.experimental import pallas as pl
from jax.experimental.pallas import tpu as pltpu


# ----------------------------------------------------------------------------
# Kernel
# ----------------------------------------------------------------------------
def _linear_kernel(x_ref, w_ref, b_ref, o_ref):
    """y = x @ W_t + b for one batch tile.

    x_ref: (tb, size_in)        VMEM (pipelined over the batch grid)
    w_ref: (size_in, size_out)  VMEM (constant index_map -> resident)
    b_ref: (1, size_out)        VMEM (resident)
    o_ref: (tb, size_out)       VMEM
    """
    acc = jnp.dot(x_ref[...], w_ref[...], preferred_element_type=jnp.float32)
    o_ref[...] = (acc + b_ref[...].astype(jnp.float32)).astype(o_ref.dtype)


# ----------------------------------------------------------------------------
# Wrapper
# ----------------------------------------------------------------------------
_COMPILER_PARAMS = pltpu.CompilerParams(
    dimension_semantics=("parallel",),      # megacore / 2-TC sharding on v7x
    vmem_limit_bytes=32 * 1024 * 1024,      # safe on v5e/v6e/v7x
)

_X_TILE_VMEM_BUDGET = 24 * 1024 * 1024      # double-buffered x tiles stay under this


def _pick_batch_tile(batch, size_in, itemsize, block_batch):
    """Batch tile: full batch when small, else block_batch clamped to VMEM."""
    if batch <= block_batch:
        return batch                        # single full-dim block, no padding
    budget_rows = _X_TILE_VMEM_BUDGET // max(1, 2 * size_in * itemsize)
    tb = min(block_batch, budget_rows)
    tb = max(8, (tb // 8) * 8)              # keep (8,128) sublane divisibility
    return tb


def output_forward(x, weight_t, bias, *, block_batch=2048):
    """y = x @ weight_t + bias  (weight_t is the pre-transposed (size_in, size_out) weight)."""
    batch, size_in = x.shape
    assert weight_t.shape[0] == size_in, "weight_t must be (size_in, size_out)"
    size_out = weight_t.shape[1]
    assert bias.shape == (size_out,)
    assert block_batch >= 8 and block_batch % 8 == 0, "block_batch must be a positive multiple of 8"

    itemsize = jnp.dtype(x.dtype).itemsize
    tb = _pick_batch_tile(batch, size_in, itemsize, block_batch)
    nb = pl.cdiv(batch, tb)                 # ragged last tile handled by Pallas OOB masking

    b2 = bias.reshape(1, size_out)

    cost = pl.CostEstimate(
        flops=2 * batch * size_in * size_out,
        transcendentals=0,
        bytes_accessed=(batch * size_in + batch * size_out) * itemsize
        + size_in * size_out * jnp.dtype(weight_t.dtype).itemsize
        + size_out * jnp.dtype(bias.dtype).itemsize,
    )

    return pl.pallas_call(
        _linear_kernel,
        out_shape=jax.ShapeDtypeStruct((batch, size_out), x.dtype),
        grid=(nb,),
        in_specs=[
            pl.BlockSpec((tb, size_in), lambda i: (i, 0)),
            pl.BlockSpec((size_in, size_out), lambda i: (0, 0)),   # resident weight
            pl.BlockSpec((1, size_out), lambda i: (0, 0)),         # resident bias
        ],
        out_specs=pl.BlockSpec((tb, size_out), lambda i: (i, 0)),
        compiler_params=_COMPILER_PARAMS,
        cost_estimate=cost,
    )(x, weight_t, b2)


# ----------------------------------------------------------------------------
# Parameter init (mirrors the PyTorch module __init__), kernel-friendly layout
# ----------------------------------------------------------------------------
def init_output_params(key, size_in, target_mean=(0.0,), dtype=jnp.float32):
    """Returns (weight_t, bias): weight_t is (size_in, size_out), bias is (size_out,) f32.

    Pass dtype=jnp.bfloat16 if activations are bf16 so the MXU runs the bf16
    path and HBM traffic for x/weight is halved; accumulation stays f32.
    """
    size_out = len(target_mean)
    # nn.init.xavier_uniform_: U(-a, a), a = sqrt(6 / (fan_in + fan_out))
    bound = math.sqrt(6.0 / (size_in + size_out))
    w_torch = jax.random.uniform(
        key, (size_out, size_in), dtype=jnp.float32, minval=-bound, maxval=bound
    )
    weight_t = w_torch.T.astype(dtype)                    # pre-transposed kernel layout
    bias = jnp.asarray(target_mean, dtype=jnp.float32)    # bias.data = tensor(target_mean)
    return weight_t, bias


# ----------------------------------------------------------------------------
# Demo / self-check
# ----------------------------------------------------------------------------
if __name__ == "__main__":
    key = jax.random.PRNGKey(0)
    k_x, k_w, k_w3, k_xb = jax.random.split(key, 4)

    batch, size_in = 8, 32
    target_mean = [0.0]                                   # default: size_out = 1

    x = jax.random.normal(k_x, (batch, size_in), dtype=jnp.float32)
    weight_t, bias = init_output_params(k_w, size_in, target_mean)   # (32, 1), (1,)

    y = output_forward(x, weight_t, bias)
    jax.block_until_ready(y)
    y_ref = x @ weight_t + bias
    assert y.shape == (batch, 1)
    assert jnp.allclose(y, y_ref, atol=1e-5, rtol=1e-5)

    # batch grid with a ragged last tile (no padded copy of x): 200 rows, tb=128
    xb = jax.random.normal(k_xb, (200, size_in), dtype=jnp.float32)
    yb = output_forward(xb, weight_t, bias, block_batch=128)
    jax.block_until_ready(yb)
    yb_ref = xb @ weight_t + bias
    assert yb.shape == (200, 1)
    assert jnp.allclose(yb, yb_ref, atol=1e-5, rtol=1e-5)

    # multitask head (size_out > 1) through the same MXU kernel
    target_mean3 = [0.0, 1.0, -1.0]
    w3, b3 = init_output_params(k_w3, size_in, target_mean3)          # (32, 3), (3,)
    y3 = output_forward(x, w3, b3)
    jax.block_until_ready(y3)
    y3_ref = x @ w3 + b3
    assert y3.shape == (batch, 3)
    assert jnp.allclose(y3, y3_ref, atol=1e-5, rtol=1e-5)

    # bf16 activations/weights (f32 accumulation inside the kernel)
    wb16, bb16 = init_output_params(k_w, size_in, target_mean, dtype=jnp.bfloat16)
    xb16 = x.astype(jnp.bfloat16)
    yb16 = output_forward(xb16, wb16, bb16)
    jax.block_until_ready(yb16)
    yb16_ref = xb16.astype(jnp.float32) @ wb16.astype(jnp.float32) + bb16
    assert yb16.shape == (batch, 1)
    assert jnp.allclose(yb16.astype(jnp.float32), yb16_ref, atol=5e-2, rtol=5e-2)

    print("KERNEL_OK")
</pallas_src>

<mosaic_0001>
module attributes {stable_mosaic.version = 11 : i64} {
  func.func @_linear_kernel(%arg0: i32, %arg1: memref<8x32xf32, #tpu.memory_space<vmem>>, %arg2: memref<32x1xf32, #tpu.memory_space<vmem>>, %arg3: memref<1x1xf32, #tpu.memory_space<vmem>>, %arg4: memref<8x1xf32, #tpu.memory_space<vmem>>) attributes {dimension_semantics = [#tpu.dimension_semantics<parallel>], iteration_bounds = array<i64: 1>, scalar_prefetch = 0 : i64, scratch_operands = 0 : i64, tpu.core_type = #tpu.core_type<tc>, window_params = [{transform_indices = @transform_0, window_bounds = array<i64: 8, 32>}, {pipeline_mode = #tpu.pipeline_mode<synchronous>, transform_indices = @transform_1, window_bounds = array<i64: 32, 1>}, {pipeline_mode = #tpu.pipeline_mode<synchronous>, transform_indices = @transform_2, window_bounds = array<i64: 1, 1>}, {transform_indices = @transform_3, window_bounds = array<i64: 8, 1>}]} {
    %c0 = arith.constant 0 : index
    %c0_0 = arith.constant 0 : index
    %0 = vector.load %arg1[%c0, %c0_0] : memref<8x32xf32, #tpu.memory_space<vmem>>, vector<8x32xf32>
    %c0_1 = arith.constant 0 : index
    %c0_2 = arith.constant 0 : index
    %1 = vector.load %arg2[%c0_1, %c0_2] : memref<32x1xf32, #tpu.memory_space<vmem>>, vector<32x1xf32>
    %cst = arith.constant dense<0.000000e+00> : vector<8x1xf32>
    %2 = tpu.matmul %0, %1, %cst {dimension_numbers = #tpu.dot_dimension_numbers<[1], [0], [0], [1], [0, 0, 1, 1], [], []>} : vector<8x32xf32>, vector<32x1xf32>, vector<8x1xf32> -> vector<8x1xf32>
    %c0_3 = arith.constant 0 : index
    %c0_4 = arith.constant 0 : index
    %3 = vector.load %arg3[%c0_3, %c0_4] : memref<1x1xf32, #tpu.memory_space<vmem>>, vector<1x1xf32>
    %4 = vector.broadcast %3 : vector<1x1xf32> to vector<8x1xf32>
    %5 = arith.addf %2, %4 : vector<8x1xf32>
    %c0_5 = arith.constant 0 : index
    %c0_6 = arith.constant 0 : index
    %6 = vector.load %arg4[%c0_5, %c0_6] : memref<8x1xf32, #tpu.memory_space<vmem>>, vector<8x1xf32>
    tpu.vector_store %arg4[%c0_5, %c0_6], %5 {strides = array<i32>} : memref<8x1xf32, #tpu.memory_space<vmem>>, vector<8x1xf32>,
    return
  }
  func.func @transform_0(%arg0: i32) -> (i32, i32) {
    %c0_i32 = arith.constant 0 : i32
    %c0_i32_0 = arith.constant 0 : i32
    return %arg0, %c0_i32 : i32, i32
  }
  func.func @transform_1(%arg0: i32) -> (i32, i32) {
    %c0_i32 = arith.constant 0 : i32
    %c0_i32_0 = arith.constant 0 : i32
    %c0_i32_1 = arith.constant 0 : i32
    return %c0_i32, %c0_i32_0 : i32, i32
  }
  func.func @transform_2(%arg0: i32) -> (i32, i32) {
    %c0_i32 = arith.constant 0 : i32
    %c0_i32_0 = arith.constant 0 : i32
    %c0_i32_1 = arith.constant 0 : i32
    return %c0_i32, %c0_i32_0 : i32, i32
  }
  func.func @transform_3(%arg0: i32) -> (i32, i32) {
    %c0_i32 = arith.constant 0 : i32
    %c0_i32_0 = arith.constant 0 : i32
    return %arg0, %c0_i32 : i32, i32
  }
}

</mosaic_0001>

<llo_original>
// kernel: tpu_custom_call.1
$region0: #{tpu_custom_call.1}
  #allocation0 [shape = 'u32[]', space=smem, size = 0x4, offset = 0x4, fixed_abs, tag = 'smem constant byte address 0x4 - core index']
  #allocation1 [shape = 'u32[144,128]{1,0:T(1,128)}', space=vmem, size = 0x12000, scoped, tag = 'internal scratch']
  #allocation2 [shape = 'f32[1,1]{1,0:T(1,128)S(1)}', space=vmem, size = 0x200, scoped, tag = 'scoped memory for tpu_custom_call.1']
  %s0 = inlined_call_operand.vmem [shape: f32[8,32], index: 0, kind: input, shape index: {}]
  %s1 = inlined_call_operand.vmem [shape: f32[32,1], index: 1, kind: input, shape index: {}]
  %s2 = inlined_call_operand.<no memory space> [shape: f32[1,1], index: 2, kind: input, shape index: {}]
  %s3 = inlined_call_operand.vmem [shape: f32[8,1], index: 3, kind: output, shape index: {}]
  %s4 = sld [smem:[#allocation0]]
  $region22: #{tpu_custom_call.1} parent=0
    _
  %s6 = ssub.s32 1, %s4
  %s7 = scalar_select 0, %s6, %s4
  %v8 = vstv %s2
  %9 = vst [vmem:[#allocation2] sm:$0x1] %v8
  // Predicated region
  $region2: #{tpu_custom_call.1} parent=0 // pred_check
    _
  $region3: #{tpu_custom_call.1} parent=0 // pred_check_branch
    %11 = sbr.rel (0) target = $region5
  $region4: #{tpu_custom_call.1} parent=0 // pred_region
    _
  $region5: #{tpu_custom_call.1} parent=0 // pred_fallthru
    _
  // Predicated region
  $region6: #{tpu_custom_call.1} parent=0 // pred_check
    _
  $region7: #{tpu_custom_call.1} parent=0 // pred_check_branch
    %13 = sbr.rel (0) target = $region9
  $region8: #{tpu_custom_call.1} parent=0 // pred_region
    _
  $region9: #{tpu_custom_call.1} parent=0 // pred_fallthru
    _
  // Predicated region
  $region10: #{tpu_custom_call.1} parent=0 // pred_check
    _
  $region11: #{tpu_custom_call.1} parent=0 // pred_check_branch
    %15 = sbr.rel (0) target = $region13
  $region12: #{tpu_custom_call.1} parent=0 // pred_region
    _
  $region13: #{tpu_custom_call.1} parent=0 // pred_fallthru
    _
  %v16 = vld [vmem:[%s0] sm:$0xff]
  %v17 = vld [vmem:[%s1] sm:$0xff]
  %v18 = vld [vmem:[%s1 + $0x8] sm:$0xff]
  %v19 = vld [vmem:[%s1 + $0x10] sm:$0xff]
  %v20 = vld [vmem:[%s1 + $0x18] sm:$0xff]
  %v21 = vld [vmem:[#allocation2] sm:$0x1]
  %v23 = vlaneseq
  %v24 = vshrl.u32 %v23, 7
  %v25 = vsub.s32 0, %v24
  %v26 = vrot.slane %v21, %v25
  %vm28 = vcmask 261120
  %v30 = vsel %vm28, %v16, 0
  %32 = vmatprep.subr.mxu0 0.0
  %33 = vmatpush1.msra.mxu0 %v17
  %34 = vmatprep.subr.mxu0 0.0
  %35 = vmatpush1.msra.mxu0 %v18
  %36 = vmatprep.subr.mxu0 0.0
  %37 = vmatpush1.msra.mxu0 %v19
  %38 = vmatprep.subr.mxu0 0.0
  %39 = vmatpush1.msra.mxu0 %v20
  %40 = vmatprep.subr.mxu0 0.0
  %41 = vmatpush1.msra.mxu0 0.0
  %42 = vmatprep.subr.mxu0 0.0
  %43 = vmatpush1.msra.mxu0 0.0
  %44 = vmatprep.subr.mxu0 0.0
  %45 = vmatpush1.msra.mxu0 0.0
  %46 = vmatprep.subr.mxu0 0.0
  %47 = vmatpush1.msra.mxu0 0.0
  %48 = vmatprep.subr.mxu0 0.0
  %49 = vmatpush1.msra.mxu0 0.0
  %50 = vmatprep.subr.mxu0 0.0
  %51 = vmatpush1.msra.mxu0 0.0
  %52 = vmatprep.subr.mxu0 0.0
  %53 = vmatpush1.msra.mxu0 0.0
  %54 = vmatprep.subr.mxu0 0.0
  %55 = vmatpush1.msra.mxu0 0.0
  %56 = vmatprep.subr.mxu0 0.0
  %57 = vmatpush1.msra.mxu0 0.0
  %58 = vmatprep.subr.mxu0 0.0
  %59 = vmatpush1.msra.mxu0 0.0
  %60 = vmatprep.subr.mxu0 0.0
  %61 = vmatpush1.msra.mxu0 0.0
  %62 = vmatprep.subr.mxu0 0.0
  %63 = vmatpush1.msra.mxu0 0.0
  %64 = vmatprep.subr.mxu0 0.0
  %65 = vmatpush1.msra.mxu0 0.0
  %66 = vmatprep.subr.mxu0 0.0
  %67 = vmatpush1.msra.mxu0 0.0
  %68 = vmatprep.subr.mxu0 0.0
  %69 = vmatpush1.msra.mxu0 0.0
  %70 = vmatprep.subr.mxu0 0.0
  %71 = vmatpush1.msra.mxu0 0.0
  %72 = vmatprep.subr.mxu0 0.0
  %73 = vmatpush1.msra.mxu0 0.0
  %74 = vmatprep.subr.mxu0 0.0
  %75 = vmatpush1.msra.mxu0 0.0
  %76 = vmatprep.subr.mxu0 0.0
  %77 = vmatpush1.msra.mxu0 0.0
  %78 = vmatprep.subr.mxu0 0.0
  %79 = vmatpush1.msra.mxu0 0.0
  %80 = vmatprep.subr.mxu0 0.0
  %81 = vmatpush1.msra.mxu0 0.0
  %82 = vmatprep.subr.mxu0 0.0
  %83 = vmatpush1.msra.mxu0 0.0
  %84 = vmatprep.subr.mxu0 0.0
  %85 = vmatpush1.msra.mxu0 0.0
  %86 = vmatprep.subr.mxu0 0.0
  %87 = vmatpush1.msra.mxu0 0.0
  %88 = vmatprep.subr.mxu0 0.0
  %89 = vmatpush1.msra.mxu0 0.0
  %90 = vmatprep.subr.mxu0 0.0
  %91 = vmatpush1.msra.mxu0 0.0
  %92 = vmatprep.subr.mxu0 0.0
  %93 = vmatpush1.msra.mxu0 0.0
  %94 = vmatprep.subr.mxu0 0.0
  %95 = vmatpush1.msra.mxu0 0.0
  %96 = vmatprep.mubr.f32.mxu0 0.0
  %97 = vmatmul.mubr.f32.gmra.mrb[0].mxu0 %v30
  %v98 = vpop.f32.mrb[0].mxu0
  %v99 = vadd.f32 %v26, %v98
  %v100 = vpop.f32.mrb[0].mxu0
  %101 = vdwg.mxu0
  %vm102 = vcmask 7168
  %103 = vst.msk [vmem:[%s3] sm:$0xff] %vm102, %v99
  // Predicated region
  $region14: #{tpu_custom_call.1} parent=0 // pred_check
    _
  $region15: #{tpu_custom_call.1} parent=0 // pred_check_branch
    %105 = sbr.rel (0) target = $region17
  $region16: #{tpu_custom_call.1} parent=0 // pred_region
    _
  $region17: #{tpu_custom_call.1} parent=0 // pred_fallthru
    _
  // Predicated region
  $region18: #{tpu_custom_call.1} parent=0 // pred_check
    _
  $region19: #{tpu_custom_call.1} parent=0 // pred_check_branch
    %107 = sbr.rel (0) target = $region21
  $region20: #{tpu_custom_call.1} parent=0 // pred_region
    _
  $region21: #{tpu_custom_call.1} parent=0 // pred_fallthru
    _

</llo_original>
